<compile_context>
chip_gen: v5e
topology: v5e:2x2
jax: 0.10.0
libtpu: 0.0.40
codegen_flags: <defaults>
</compile_context>

<pallas_src>
import functools

import jax
import jax.numpy as jnp
from jax.experimental import pallas as pl
from jax.experimental.pallas import tpu as pltpu


def _round_up(n, m):
    return ((n + m - 1) // m) * m


def _physical_vmem_bytes():
    """Physical VMEM capacity (128 MiB v5e/v6e, 64 MiB per-core v7x)."""
    try:
        cap = getattr(pltpu.get_tpu_info(), "vmem_capacity_bytes", None)
        if cap:
            return int(cap)
    except Exception:
        pass
    return 64 * 1024 * 1024  # conservative fallback: v7x per-core capacity


def kmeans_kernel(x_ref, c_ref, ct_ref, csq_ref, o_ref, *, inv_T2, K, B, TB):
    x = x_ref[...].astype(jnp.float32)    # (TB, D) cast right after load (bf16 I/O path)
    c = c_ref[...]                        # (K,  D) f32, grid-invariant
    ct = ct_ref[...]                      # (D,  K) f32, grid-invariant (pre-transposed)
    c_sq = csq_ref[...]                   # (1,  K) f32, precomputed ||c||^2

    # Squared distances via the Gram identity; both contractions run on the MXU
    # and avoid any (TB, K, D) broadcast intermediate.
    x_sq = jnp.sum(x * x, axis=-1, keepdims=True)                   # (TB, 1)
    xc = jnp.dot(x, ct, preferred_element_type=jnp.float32)         # (TB, K)
    sq = jnp.maximum(x_sq + c_sq - 2.0 * xc, 0.0)   # clamp fp negatives pre-sqrt

    # Both temperature divisions folded into one compile-time scale 1/T^2.
    z = -jnp.sqrt(sq) * inv_T2                                      # (TB, K)

    # Numerically stable softmax; denominator reciprocal on the (idle) EUP.
    zmax = jnp.max(z, axis=-1, keepdims=True)
    e = jnp.exp(z - zmax)
    y_soft = e * pl.reciprocal(jnp.sum(e, axis=-1, keepdims=True), approx=True)

    # First-max index (torch tie-breaks to the first maximal element).
    # argmax(z) == argmax(y_soft) since softmax is monotone; reuse zmax.
    kiota = jax.lax.broadcasted_iota(jnp.int32, z.shape, 1)         # (TB, K)
    idx = jnp.min(jnp.where(z == zmax, kiota, K), axis=-1, keepdims=True)
    y_hard = (kiota == idx).astype(jnp.float32)                     # (TB, K)

    # Straight-through estimator value (same op order as torch).
    result = (y_hard - y_soft) + y_soft                             # (TB, K)

    # Final projection onto the centers (MXU matmul).
    out = jnp.dot(result, c, preferred_element_type=jnp.float32)    # (TB, D)

    # Ragged last batch tile: zero any rows past the end of the batch so
    # garbage from out-of-range input rows can never reach the written window.
    rows_left = B - pl.program_id(0) * TB
    row_ok = jax.lax.broadcasted_iota(jnp.int32, out.shape, 0) < rows_left
    o_ref[...] = jnp.where(row_ok, out, 0.0).astype(o_ref.dtype)


def kmeans_nn_forward(x, center, T):
    B, D = x.shape
    K, _ = center.shape

    # bf16 inputs stream as bf16 (halved HBM bytes) and are upcast in-kernel;
    # everything else (incl. torch's f64) streams/computes in f32.
    in_dtype = jnp.bfloat16 if x.dtype == jnp.bfloat16 else jnp.float32
    x = x.astype(in_dtype)
    out_dtype = in_dtype

    center = center.astype(jnp.float32)
    center_t = center.T                                   # (D, K), tiny
    c_sq = jnp.sum(center * center, axis=-1)[None, :]     # (1, K), hoisted ||c||^2

    # --- VMEM budget (generation-aware) -------------------------------------
    # Use ~3/4 of physical VMEM as the scoped limit (v7x: ~48 MiB, v5e/v6e:
    # ~96 MiB) and size the batch tile against it, leaving headroom for
    # Mosaic's internal scratch.
    phys_vmem = _physical_vmem_bytes()
    vmem_limit = min((phys_vmem * 3) // 4, 100 * 1024 * 1024)

    d_lane = _round_up(D, 128)      # lane-padded row width in VMEM
    k_lane = _round_up(K, 128)      # lane-padded width of the (TB, K) chain
    in_bytes = jnp.dtype(in_dtype).itemsize
    out_bytes = jnp.dtype(out_dtype).itemsize

    # Grid-invariant residents: center, center^T, ||c||^2 (x2 safety factor in
    # case the single-buffer hint is unavailable and they get double-buffered).
    const_bytes = 2 * 4 * (_round_up(K, 8) * d_lane       # center
                           + _round_up(D, 8) * k_lane     # center^T
                           + 8 * k_lane)                  # ||c||^2

    # Per batch-row bytes: double-buffered x/out I/O tiles + f32 working copies
    # of the row + the (TB, K) f32 softmax/argmax chain kept live.
    per_row = (2 * d_lane * in_bytes        # x tile, double-buffered
               + 2 * d_lane * out_bytes     # out tile, double-buffered
               + 2 * d_lane * 4             # f32 row copies (x, projection)
               + 10 * k_lane * 4)           # xc/sq/z/e/y_soft/iota/... chain

    budget = int(vmem_limit * 0.9) - const_bytes
    n_rows = _round_up(B, 8)
    tb = max(8, budget // per_row)          # byte-sized tile, no row cap
    tb = min(tb, n_rows)
    tb = max(8, (tb // 8) * 8)
    # Ensure the "parallel" grid axis has >= 2 steps whenever B allows it, so
    # both v7x TensorCores get work (per-step overhead is negligible on 1-TC
    # v5e/v6e).
    if tb >= n_rows and B > 8:
        tb = _round_up(pl.cdiv(B, 2), 8)
    grid = (pl.cdiv(B, tb),)                # ragged last tile, no jnp.pad of x

    kernel = functools.partial(kmeans_kernel, inv_T2=float(1.0 / (T * T)),
                               K=K, B=B, TB=tb)

    cost = pl.CostEstimate(
        flops=4 * B * K * D,                # Gram matmul + projection matmul
        transcendentals=2 * B * K,          # exp + sqrt
        bytes_accessed=B * D * (in_bytes + out_bytes) + 3 * K * D * 4,
    )

    def run(single_buffer_residents):
        res_kw = {}
        if single_buffer_residents:
            # Constant index_map -> one VMEM buffer suffices; frees the second
            # (double-buffer) copy of the centers for bigger batch tiles.
            res_kw = dict(pipeline_mode=pl.Buffered(1))
        return pl.pallas_call(
            kernel,
            out_shape=jax.ShapeDtypeStruct((B, D), out_dtype),
            grid=grid,
            in_specs=[
                pl.BlockSpec((tb, D), lambda i: (i, 0)),            # x: batch-tiled
                pl.BlockSpec((K, D), lambda i: (0, 0), **res_kw),   # center
                pl.BlockSpec((D, K), lambda i: (0, 0), **res_kw),   # center^T
                pl.BlockSpec((1, K), lambda i: (0, 0), **res_kw),   # ||c||^2
            ],
            out_specs=pl.BlockSpec((tb, D), lambda i: (i, 0)),
            compiler_params=pltpu.CompilerParams(
                dimension_semantics=("parallel",),   # independent batch tiles
                vmem_limit_bytes=int(vmem_limit),
            ),
            cost_estimate=cost,
        )(x, center, center_t, c_sq)

    try:
        return jax.block_until_ready(run(True))
    except Exception:
        # Older builds may reject pipeline_mode=pl.Buffered(1); default
        # double-buffered residents are functionally identical.
        return run(False)


def kmeans_nn_reference(x, center, T):
    x = x.astype(jnp.float32)
    center = center.astype(jnp.float32)
    diff = x[:, None, :] - center[None, :, :]
    att_logit = -jnp.sqrt(jnp.sum(diff * diff, axis=-1)) / T
    y_soft = jax.nn.softmax(att_logit / T, axis=-1)
    idx = jnp.argmax(y_soft, axis=-1)
    y_hard = jax.nn.one_hot(idx, center.shape[0], dtype=y_soft.dtype)
    result = (y_hard - y_soft) + y_soft
    return result @ center


if __name__ == "__main__":
    B, D, K = 8, 32, 8
    T = 0.5

    key = jax.random.PRNGKey(0)
    kx, kc = jax.random.split(key)
    x = jax.random.normal(kx, (B, D), dtype=jnp.float32)
    # nn.init.normal_(center, std=0.01), deterministic.
    center = 0.01 * jax.random.normal(kc, (K, D), dtype=jnp.float32)

    out = kmeans_nn_forward(x, center, T)
    out = jax.block_until_ready(out)

    ref = kmeans_nn_reference(x, center, T)
    assert out.shape == (B, D)
    assert out.dtype == jnp.float32
    assert jnp.allclose(out, ref, atol=1e-5, rtol=1e-5), (out, ref)

    print("KERNEL_OK")
</pallas_src>

<mosaic_0001>
module attributes {stable_mosaic.version = 11 : i64} {
  func.func @kmeans_kernel(%arg0: i32, %arg1: memref<8x32xf32, #tpu.memory_space<vmem>>, %arg2: memref<8x32xf32, #tpu.memory_space<vmem>>, %arg3: memref<32x8xf32, #tpu.memory_space<vmem>>, %arg4: memref<1x8xf32, #tpu.memory_space<vmem>>, %arg5: memref<8x32xf32, #tpu.memory_space<vmem>>) attributes {dimension_semantics = [#tpu.dimension_semantics<parallel>], iteration_bounds = array<i64: 1>, scalar_prefetch = 0 : i64, scratch_operands = 0 : i64, tpu.core_type = #tpu.core_type<tc>, window_params = [{transform_indices = @transform_0, window_bounds = array<i64: 8, 32>}, {pipeline_mode = #tpu.pipeline_mode<synchronous>, transform_indices = @transform_1, window_bounds = array<i64: 8, 32>}, {pipeline_mode = #tpu.pipeline_mode<synchronous>, transform_indices = @transform_2, window_bounds = array<i64: 32, 8>}, {pipeline_mode = #tpu.pipeline_mode<synchronous>, transform_indices = @transform_3, window_bounds = array<i64: 1, 8>}, {transform_indices = @transform_4, window_bounds = array<i64: 8, 32>}]} {
    %c0 = arith.constant 0 : index
    %c0_0 = arith.constant 0 : index
    %0 = vector.load %arg1[%c0, %c0_0] : memref<8x32xf32, #tpu.memory_space<vmem>>, vector<8x32xf32>
    %c0_1 = arith.constant 0 : index
    %c0_2 = arith.constant 0 : index
    %1 = vector.load %arg2[%c0_1, %c0_2] : memref<8x32xf32, #tpu.memory_space<vmem>>, vector<8x32xf32>
    %c0_3 = arith.constant 0 : index
    %c0_4 = arith.constant 0 : index
    %2 = vector.load %arg3[%c0_3, %c0_4] : memref<32x8xf32, #tpu.memory_space<vmem>>, vector<32x8xf32>
    %c0_5 = arith.constant 0 : index
    %c0_6 = arith.constant 0 : index
    %3 = vector.load %arg4[%c0_5, %c0_6] : memref<1x8xf32, #tpu.memory_space<vmem>>, vector<1x8xf32>
    %4 = arith.mulf %0, %0 : vector<8x32xf32>
    %cst = arith.constant dense<0.000000e+00> : vector<8xf32>
    %5 = vector.multi_reduction <add>, %4, %cst [1] : vector<8x32xf32> to vector<8xf32>
    %6 = vector.shape_cast %5 : vector<8xf32> to vector<8x1xf32>
    %cst_7 = arith.constant dense<0.000000e+00> : vector<8x8xf32>
    %7 = tpu.matmul %0, %2, %cst_7 {dimension_numbers = #tpu.dot_dimension_numbers<[1], [0], [0], [1], [0, 0, 1, 1], [], []>} : vector<8x32xf32>, vector<32x8xf32>, vector<8x8xf32> -> vector<8x8xf32>
    %8 = vector.broadcast %6 : vector<8x1xf32> to vector<8x8xf32>
    %9 = vector.broadcast %3 : vector<1x8xf32> to vector<8x8xf32>
    %10 = arith.addf %8, %9 : vector<8x8xf32>
    %cst_8 = arith.constant 2.000000e+00 : f32
    %11 = vector.broadcast %cst_8 : f32 to vector<8x8xf32>
    %12 = arith.mulf %11, %7 : vector<8x8xf32>
    %13 = arith.subf %10, %12 : vector<8x8xf32>
    %cst_9 = arith.constant 0.000000e+00 : f32
    %14 = vector.broadcast %cst_9 : f32 to vector<8x8xf32>
    %15 = arith.maximumf %13, %14 : vector<8x8xf32>
    %16 = math.sqrt %15 : vector<8x8xf32>
    %cst_10 = arith.constant 0.000000e+00 : f32
    %17 = vector.broadcast %cst_10 : f32 to vector<8x8xf32>
    %18 = arith.subf %17, %16 : vector<8x8xf32>
    %cst_11 = arith.constant 4.000000e+00 : f32
    %19 = vector.broadcast %cst_11 : f32 to vector<8x8xf32>
    %20 = arith.mulf %18, %19 : vector<8x8xf32>
    %cst_12 = arith.constant dense<0xFF800000> : vector<8xf32>
    %21 = vector.multi_reduction <maximumf>, %20, %cst_12 [1] : vector<8x8xf32> to vector<8xf32>
    %22 = vector.shape_cast %21 : vector<8xf32> to vector<8x1xf32>
    %23 = vector.broadcast %22 : vector<8x1xf32> to vector<8x8xf32>
    %24 = arith.subf %20, %23 : vector<8x8xf32>
    %25 = math.exp %24 : vector<8x8xf32>
    %cst_13 = arith.constant dense<0.000000e+00> : vector<8xf32>
    %26 = vector.multi_reduction <add>, %25, %cst_13 [1] : vector<8x8xf32> to vector<8xf32>
    %27 = vector.shape_cast %26 : vector<8xf32> to vector<8x1xf32>
    %28 = tpu.reciprocal %27 {approx = true} : vector<8x1xf32> -> vector<8x1xf32>
    %29 = vector.broadcast %28 : vector<8x1xf32> to vector<8x8xf32>
    %30 = arith.mulf %25, %29 : vector<8x8xf32>
    %31 = tpu.iota {dimensions = array<i32: 1>} : vector<8x8xi32>
    %32 = vector.broadcast %22 : vector<8x1xf32> to vector<8x8xf32>
    %33 = arith.cmpf oeq, %20, %32 : vector<8x8xf32>
    %c8_i32 = arith.constant 8 : i32
    %34 = vector.broadcast %c8_i32 : i32 to vector<8x8xi32>
    %35 = arith.select %33, %31, %34 : vector<8x8xi1>, vector<8x8xi32>
    %cst_14 = arith.constant dense<2147483647> : vector<8xi32>
    %36 = vector.multi_reduction <minsi>, %35, %cst_14 [1] : vector<8x8xi32> to vector<8xi32>
    %37 = vector.shape_cast %36 : vector<8xi32> to vector<8x1xi32>
    %38 = vector.broadcast %37 : vector<8x1xi32> to vector<8x8xi32>
    %39 = arith.cmpi eq, %31, %38 : vector<8x8xi32>
    %40 = arith.extui %39 : vector<8x8xi1> to vector<8x8xi32>
    %41 = arith.sitofp %40 : vector<8x8xi32> to vector<8x8xf32>
    %42 = arith.subf %41, %30 : vector<8x8xf32>
    %43 = arith.addf %42, %30 : vector<8x8xf32>
    %cst_15 = arith.constant dense<0.000000e+00> : vector<8x32xf32>
    %44 = tpu.matmul %43, %1, %cst_15 {dimension_numbers = #tpu.dot_dimension_numbers<[1], [0], [0], [1], [0, 0, 1, 1], [], []>} : vector<8x8xf32>, vector<8x32xf32>, vector<8x32xf32> -> vector<8x32xf32>
    %c8_i32_16 = arith.constant 8 : i32
    %45 = arith.muli %arg0, %c8_i32_16 : i32
    %c8_i32_17 = arith.constant 8 : i32
    %46 = arith.subi %c8_i32_17, %45 : i32
    %47 = tpu.iota {dimensions = array<i32: 0>} : vector<8x32xi32>
    %48 = vector.broadcast %46 : i32 to vector<8x32xi32>
    %49 = arith.cmpi slt, %47, %48 : vector<8x32xi32>
    %cst_18 = arith.constant 0.000000e+00 : f32
    %50 = vector.broadcast %cst_18 : f32 to vector<8x32xf32>
    %51 = arith.select %49, %44, %50 : vector<8x32xi1>, vector<8x32xf32>
    %c0_19 = arith.constant 0 : index
    %c0_20 = arith.constant 0 : index
    %52 = vector.load %arg5[%c0_19, %c0_20] : memref<8x32xf32, #tpu.memory_space<vmem>>, vector<8x32xf32>
    tpu.vector_store %arg5[%c0_19, %c0_20], %51 {strides = array<i32>} : memref<8x32xf32, #tpu.memory_space<vmem>>, vector<8x32xf32>,
    return
  }
  func.func @transform_0(%arg0: i32) -> (i32, i32) {
    %c0_i32 = arith.constant 0 : i32
    %c0_i32_0 = arith.constant 0 : i32
    return %arg0, %c0_i32 : i32, i32
  }
  func.func @transform_1(%arg0: i32) -> (i32, i32) {
    %c0_i32 = arith.constant 0 : i32
    %c0_i32_0 = arith.constant 0 : i32
    %c0_i32_1 = arith.constant 0 : i32
    return %c0_i32, %c0_i32_0 : i32, i32
  }
  func.func @transform_2(%arg0: i32) -> (i32, i32) {
    %c0_i32 = arith.constant 0 : i32
    %c0_i32_0 = arith.constant 0 : i32
    %c0_i32_1 = arith.constant 0 : i32
    return %c0_i32, %c0_i32_0 : i32, i32
  }
  func.func @transform_3(%arg0: i32) -> (i32, i32) {
    %c0_i32 = arith.constant 0 : i32
    %c0_i32_0 = arith.constant 0 : i32
    %c0_i32_1 = arith.constant 0 : i32
    return %c0_i32, %c0_i32_0 : i32, i32
  }
  func.func @transform_4(%arg0: i32) -> (i32, i32) {
    %c0_i32 = arith.constant 0 : i32
    %c0_i32_0 = arith.constant 0 : i32
    return %arg0, %c0_i32 : i32, i32
  }
}

module attributes {stable_mosaic.version = 11 : i64} {
  func.func @kmeans_kernel(%arg0: i32, %arg1: memref<8x32xf32, #tpu.memory_space<vmem>>, %arg2: memref<8x32xf32, #tpu.memory_space<vmem>>, %arg3: memref<32x8xf32, #tpu.memory_space<vmem>>, %arg4: memref<1x8xf32, #tpu.memory_space<vmem>>, %arg5: memref<8x32xf32, #tpu.memory_space<vmem>>) attributes {dimension_semantics = [#tpu.dimension_semantics<parallel>], iteration_bounds = array<i64: 1>, scalar_prefetch = 0 : i64, scratch_operands = 0 : i64, tpu.core_type = #tpu.core_type<tc>, window_params = [{transform_indices = @transform_0, window_bounds = array<i64: 8, 32>}, {pipeline_mode = #tpu.pipeline_mode<synchronous>, transform_indices = @transform_1, window_bounds = array<i64: 8, 32>}, {pipeline_mode = #tpu.pipeline_mode<synchronous>, transform_indices = @transform_2, window_bounds = array<i64: 32, 8>}, {pipeline_mode = #tpu.pipeline_mode<synchronous>, transform_indices = @transform_3, window_bounds = array<i64: 1, 8>}, {transform_indices = @transform_4, window_bounds = array<i64: 8, 32>}]} {
    %c0 = arith.constant 0 : index
    %c0_0 = arith.constant 0 : index
    %0 = vector.load %arg1[%c0, %c0_0] : memref<8x32xf32, #tpu.memory_space<vmem>>, vector<8x32xf32>
    %c0_1 = arith.constant 0 : index
    %c0_2 = arith.constant 0 : index
    %1 = vector.load %arg2[%c0_1, %c0_2] : memref<8x32xf32, #tpu.memory_space<vmem>>, vector<8x32xf32>
    %c0_3 = arith.constant 0 : index
    %c0_4 = arith.constant 0 : index
    %2 = vector.load %arg3[%c0_3, %c0_4] : memref<32x8xf32, #tpu.memory_space<vmem>>, vector<32x8xf32>
    %c0_5 = arith.constant 0 : index
    %c0_6 = arith.constant 0 : index
    %3 = vector.load %arg4[%c0_5, %c0_6] : memref<1x8xf32, #tpu.memory_space<vmem>>, vector<1x8xf32>
    %4 = arith.mulf %0, %0 : vector<8x32xf32>
    %cst = arith.constant dense<0.000000e+00> : vector<8xf32>
    %5 = vector.multi_reduction <add>, %4, %cst [1] : vector<8x32xf32> to vector<8xf32>
    %6 = vector.shape_cast %5 : vector<8xf32> to vector<8x1xf32>
    %cst_7 = arith.constant dense<0.000000e+00> : vector<8x8xf32>
    %7 = tpu.matmul %0, %2, %cst_7 {dimension_numbers = #tpu.dot_dimension_numbers<[1], [0], [0], [1], [0, 0, 1, 1], [], []>} : vector<8x32xf32>, vector<32x8xf32>, vector<8x8xf32> -> vector<8x8xf32>
    %8 = vector.broadcast %6 : vector<8x1xf32> to vector<8x8xf32>
    %9 = vector.broadcast %3 : vector<1x8xf32> to vector<8x8xf32>
    %10 = arith.addf %8, %9 : vector<8x8xf32>
    %cst_8 = arith.constant 2.000000e+00 : f32
    %11 = vector.broadcast %cst_8 : f32 to vector<8x8xf32>
    %12 = arith.mulf %11, %7 : vector<8x8xf32>
    %13 = arith.subf %10, %12 : vector<8x8xf32>
    %cst_9 = arith.constant 0.000000e+00 : f32
    %14 = vector.broadcast %cst_9 : f32 to vector<8x8xf32>
    %15 = arith.maximumf %13, %14 : vector<8x8xf32>
    %16 = math.sqrt %15 : vector<8x8xf32>
    %cst_10 = arith.constant 0.000000e+00 : f32
    %17 = vector.broadcast %cst_10 : f32 to vector<8x8xf32>
    %18 = arith.subf %17, %16 : vector<8x8xf32>
    %cst_11 = arith.constant 4.000000e+00 : f32
    %19 = vector.broadcast %cst_11 : f32 to vector<8x8xf32>
    %20 = arith.mulf %18, %19 : vector<8x8xf32>
    %cst_12 = arith.constant dense<0xFF800000> : vector<8xf32>
    %21 = vector.multi_reduction <maximumf>, %20, %cst_12 [1] : vector<8x8xf32> to vector<8xf32>
    %22 = vector.shape_cast %21 : vector<8xf32> to vector<8x1xf32>
    %23 = vector.broadcast %22 : vector<8x1xf32> to vector<8x8xf32>
    %24 = arith.subf %20, %23 : vector<8x8xf32>
    %25 = math.exp %24 : vector<8x8xf32>
    %cst_13 = arith.constant dense<0.000000e+00> : vector<8xf32>
    %26 = vector.multi_reduction <add>, %25, %cst_13 [1] : vector<8x8xf32> to vector<8xf32>
    %27 = vector.shape_cast %26 : vector<8xf32> to vector<8x1xf32>
    %28 = tpu.reciprocal %27 {approx = true} : vector<8x1xf32> -> vector<8x1xf32>
    %29 = vector.broadcast %28 : vector<8x1xf32> to vector<8x8xf32>
    %30 = arith.mulf %25, %29 : vector<8x8xf32>
    %31 = tpu.iota {dimensions = array<i32: 1>} : vector<8x8xi32>
    %32 = vector.broadcast %22 : vector<8x1xf32> to vector<8x8xf32>
    %33 = arith.cmpf oeq, %20, %32 : vector<8x8xf32>
    %c8_i32 = arith.constant 8 : i32
    %34 = vector.broadcast %c8_i32 : i32 to vector<8x8xi32>
    %35 = arith.select %33, %31, %34 : vector<8x8xi1>, vector<8x8xi32>
    %cst_14 = arith.constant dense<2147483647> : vector<8xi32>
    %36 = vector.multi_reduction <minsi>, %35, %cst_14 [1] : vector<8x8xi32> to vector<8xi32>
    %37 = vector.shape_cast %36 : vector<8xi32> to vector<8x1xi32>
    %38 = vector.broadcast %37 : vector<8x1xi32> to vector<8x8xi32>
    %39 = arith.cmpi eq, %31, %38 : vector<8x8xi32>
    %40 = arith.extui %39 : vector<8x8xi1> to vector<8x8xi32>
    %41 = arith.sitofp %40 : vector<8x8xi32> to vector<8x8xf32>
    %42 = arith.subf %41, %30 : vector<8x8xf32>
    %43 = arith.addf %42, %30 : vector<8x8xf32>
    %cst_15 = arith.constant dense<0.000000e+00> : vector<8x32xf32>
    %44 = tpu.matmul %43, %1, %cst_15 {dimension_numbers = #tpu.dot_dimension_numbers<[1], [0], [0], [1], [0, 0, 1, 1], [], []>} : vector<8x8xf32>, vector<8x32xf32>, vector<8x32xf32> -> vector<8x32xf32>
    %c8_i32_16 = arith.constant 8 : i32
    %45 = arith.muli %arg0, %c8_i32_16 : i32
    %c8_i32_17 = arith.constant 8 : i32
    %46 = arith.subi %c8_i32_17, %45 : i32
    %47 = tpu.iota {dimensions = array<i32: 0>} : vector<8x32xi32>
    %48 = vector.broadcast %46 : i32 to vector<8x32xi32>
    %49 = arith.cmpi slt, %47, %48 : vector<8x32xi32>
    %cst_18 = arith.constant 0.000000e+00 : f32
    %50 = vector.broadcast %cst_18 : f32 to vector<8x32xf32>
    %51 = arith.select %49, %44, %50 : vector<8x32xi1>, vector<8x32xf32>
    %c0_19 = arith.constant 0 : index
    %c0_20 = arith.constant 0 : index
    %52 = vector.load %arg5[%c0_19, %c0_20] : memref<8x32xf32, #tpu.memory_space<vmem>>, vector<8x32xf32>
    tpu.vector_store %arg5[%c0_19, %c0_20], %51 {strides = array<i32>} : memref<8x32xf32, #tpu.memory_space<vmem>>, vector<8x32xf32>,
    return
  }
  func.func @transform_0(%arg0: i32) -> (i32, i32) {
    %c0_i32 = arith.constant 0 : i32
    %c0_i32_0 = arith.constant 0 : i32
    return %arg0, %c0_i32 : i32, i32
  }
  func.func @transform_1(%arg0: i32) -> (i32, i32) {
    %c0_i32 = arith.constant 0 : i32
    %c0_i32_0 = arith.constant 0 : i32
    %c0_i32_1 = arith.constant 0 : i32
    return %c0_i32, %c0_i32_0 : i32, i32
  }
  func.func @transform_2(%arg0: i32) -> (i32, i32) {
    %c0_i32 = arith.constant 0 : i32
    %c0_i32_0 = arith.constant 0 : i32
    %c0_i32_1 = arith.constant 0 : i32
    return %c0_i32, %c0_i32_0 : i32, i32
  }
  func.func @transform_3(%arg0: i32) -> (i32, i32) {
    %c0_i32 = arith.constant 0 : i32
    %c0_i32_0 = arith.constant 0 : i32
    %c0_i32_1 = arith.constant 0 : i32
    return %c0_i32, %c0_i32_0 : i32, i32
  }
  func.func @transform_4(%arg0: i32) -> (i32, i32) {
    %c0_i32 = arith.constant 0 : i32
    %c0_i32_0 = arith.constant 0 : i32
    return %arg0, %c0_i32 : i32, i32
  }
}

</mosaic_0001>

<llo_original>
// kernel: tpu_custom_call.1
$region0: #{tpu_custom_call.1}
  #allocation0 [shape = 'u32[]', space=smem, size = 0x4, offset = 0x4, fixed_abs, tag = 'smem constant byte address 0x4 - core index']
  #allocation1 [shape = 'u32[72,128]{1,0:T(1,128)}', space=vmem, size = 0x9000, scoped, tag = 'internal scratch']
  %s0 = inlined_call_operand.vmem [shape: f32[8,32], index: 0, kind: input, shape index: {}]
  %s1 = inlined_call_operand.vmem [shape: f32[8,32], index: 1, kind: input, shape index: {}]
  %s2 = inlined_call_operand.vmem [shape: f32[32,8], index: 2, kind: input, shape index: {}]
  %s3 = inlined_call_operand.vmem [shape: f32[1,8], index: 3, kind: input, shape index: {}]
  %s4 = inlined_call_operand.hbm [shape: f32[8,32], index: 4, kind: output, shape index: {}]
  %s5 = sld [smem:[#allocation0]]
  $region26: #{tpu_custom_call.1} parent=0
    _
  %s7 = ssub.s32 1, %s5
  %s8 = scalar_select 0, %s7, %s5
  $region1: #{tpu_custom_call.1} parent=0
    #allocation2 [shape = 'u8[4096]{0}', space=vmem, size = 0x1000, scoped, tag = 'output window, operand 0, single buffered']
    #allocation3 [shape = 's32[1]{0}', space=sflag, size = 0x4, scoped, tag = 'scoped memory for tpu_custom_call.1']
    %9 = vsyncpa [#allocation3], 0
    // Predicated region
    $region2: #{tpu_custom_call.1} parent=1 // pred_check
      _
    $region3: #{tpu_custom_call.1} parent=1 // pred_check_branch
      %11 = sbr.rel (0) target = $region5
    $region4: #{tpu_custom_call.1} parent=1 // pred_region
      _
    $region5: #{tpu_custom_call.1} parent=1 // pred_fallthru
      _
    // Predicated region
    $region6: #{tpu_custom_call.1} parent=1 // pred_check
      _
    $region7: #{tpu_custom_call.1} parent=1 // pred_check_branch
      %13 = sbr.rel (0) target = $region9
    $region8: #{tpu_custom_call.1} parent=1 // pred_region
      _
    $region9: #{tpu_custom_call.1} parent=1 // pred_fallthru
      _
    // Predicated region
    $region10: #{tpu_custom_call.1} parent=1 // pred_check
      _
    $region11: #{tpu_custom_call.1} parent=1 // pred_check_branch
      %15 = sbr.rel (0) target = $region13
    $region12: #{tpu_custom_call.1} parent=1 // pred_region
      _
    $region13: #{tpu_custom_call.1} parent=1 // pred_fallthru
      _
    // Predicated region
    $region14: #{tpu_custom_call.1} parent=1 // pred_check
      _
    $region15: #{tpu_custom_call.1} parent=1 // pred_check_branch
      %17 = sbr.rel (0) target = $region17
    $region16: #{tpu_custom_call.1} parent=1 // pred_region
      _
    $region17: #{tpu_custom_call.1} parent=1 // pred_fallthru
      _
    %v18 = vld [vmem:[%s0] sm:$0xff]
    %v19 = vld [vmem:[%s1] sm:$0xff]
    %v20 = vld [vmem:[%s2] sm:$0xff]
    %v21 = vld [vmem:[%s2 + $0x8] sm:$0xff]
    %v22 = vld [vmem:[%s2 + $0x10] sm:$0xff]
    %v23 = vld [vmem:[%s2 + $0x18] sm:$0xff]
    %v24 = vld [vmem:[%s3] sm:$0x1]
    %v25 = vmul.f32 %v18, %v18
    %vm26 = vcmask 261120
    %v27 = vsel %vm26, %v25, 0.0
    %28 = vadd.xlane.f32.xlu0 %v27
    %v29 = vpop.xlane.xlu0 %28
    %v31 = vsel %vm26, %v18, 0
    %33 = vmatpush.msra.mxu0 0.0
    %34 = vmatpush.msra.mxu0 0.0
    %35 = vmatpush.msra.mxu0 0.0
    %36 = vmatpush.msra.mxu0 0.0
    %37 = vmatpush.msra.mxu0 0.0
    %38 = vmatpush.msra.mxu0 0.0
    %39 = vmatpush.msra.mxu0 0.0
    %40 = vmatpush.msra.mxu0 0.0
    %41 = vmatpush.msra.mxu0 0.0
    %42 = vmatpush.msra.mxu0 0.0
    %43 = vmatpush.msra.mxu0 0.0
    %44 = vmatpush.msra.mxu0 0.0
    %45 = vmatpush.msra.mxu0 %v23
    %46 = vmatpush.msra.mxu0 %v22
    %47 = vmatpush.msra.mxu0 %v21
    %48 = vmatpush.msra.mxu0 %v20
    %49 = vmatmul.f32.gmra.mxu0 %v31
    %v50 = vpop.f32.mrf.mxu0
    %v51 = vadd.f32 0.0, %v50
    %52 = vdwg.mxu0
    %v54 = vperm.slane %v24, 0
    %v56 = vadd.f32 %v29, %v54
    %v57 = vmul.f32 %v51, 2.0
    %v58 = vsub.f32 %v56, %v57
    %v59 = vmax.f32 %v58, 0.0
    %v60 = vrsqrt.pop %v59
    %v61 = vmul.f32 %v60, %v59
    %v62 = vmul.f32 %v61, %v60
    %v63 = vmul.f32 0.5, %v62
    %v64 = vsub.f32 1.5, %v63
    %v65 = vmul.f32 %v60, %v64
    %v66 = vmul.f32 %v59, %v65
    %vm67 = vcmp.eq.f32.partialorder %v59, inf
    %v68 = vsel %vm67, %v59, %v66
    %vm69 = vcmp.eq.f32.partialorder %v59, 0.0
    %v70 = vand.u32 %v59, 2147483648
    %v71 = vsel %vm69, %v70, %v68
    %v72 = vsub.f32 0.0, %v71
    %v73 = vmul.f32 %v72, 4.0
    %vm74 = vcmask 64512
    %v75 = vsel %vm74, %v73, -inf
    %76 = vmax.xlane.f32.xlu0 %v75
    %v77 = vpop.xlane.xlu0 %76
    %v78 = vsub.f32 %v73, %v77
    %v79 = vmul.f32 %v78, 1.442695
    %v80 = vpow.pop %v79
    %v81 = vsel %vm74, %v80, 0.0
    %82 = vadd.xlane.f32.xlu0 %v81
    %v83 = vpop.xlane.xlu0 %82
    %v84 = vrcp.pop %v83
    %v85 = vmul.f32 %v80, %v84
    %v86 = vlaneseq
    %v87 = vand.u32 %v86, 127
    %vm88 = vcmp.eq.f32.partialorder %v73, %v77
    %v89 = vsel %vm88, %v87, 8
    %v90 = vsel %vm74, %v89, 2147483647
    %v91 = vand.u32 %v90, 65535
    %v92 = vshra.s32 %v90, 16
    %v93 = vcvt.s32.f32 %v91
    %v94 = vcvt.s32.f32 %v92
    %95 = vmin.xlane.f32.xlu0 %v94
    %v96 = vpop.xlane.xlu0 %95
    %vm97 = vcmp.eq.f32.partialorder %v94, %v96
    %v98 = vsel %vm97, %v93, inf
    %99 = vmin.xlane.f32.xlu0 %v98
    %v100 = vpop.xlane.xlu0 %99
    %v101 = vcvt.f32.s32 %v100
    %v102 = vcvt.f32.s32 %v96
    %v103 = vshll.u32 %v102, 16
    %v104 = vadd.s32 %v103, %v101
    %vm105 = vcmp.eq.s32.totalorder %v87, %v104
    %v106 = vsel %vm105, 1, 0
    %v107 = vcvt.s32.f32 %v106
    %v108 = vsub.f32 %v107, %v85
    %v109 = vadd.f32 %v108, %v85
    %v111 = vsel %vm74, %v109, 0
    %113 = vmatpush.msra.mxu0 0.0
    %114 = vmatpush.msra.mxu0 0.0
    %115 = vmatpush.msra.mxu0 0.0
    %116 = vmatpush.msra.mxu0 0.0
    %117 = vmatpush.msra.mxu0 0.0
    %118 = vmatpush.msra.mxu0 0.0
    %119 = vmatpush.msra.mxu0 0.0
    %120 = vmatpush.msra.mxu0 0.0
    %121 = vmatpush.msra.mxu0 0.0
    %122 = vmatpush.msra.mxu0 0.0
    %123 = vmatpush.msra.mxu0 0.0
    %124 = vmatpush.msra.mxu0 0.0
    %125 = vmatpush.msra.mxu0 0.0
    %126 = vmatpush.msra.mxu0 0.0
    %127 = vmatpush.msra.mxu0 0.0
    %128 = vmatpush.msra.mxu0 %v19
    %129 = vmatmul.f32.gmra.mxu0 %v111
    %v130 = vpop.f32.mrf.mxu0
    %v131 = vadd.f32 0.0, %v130
    %132 = vdwg.mxu0
    %s133 = smul.u32 0, 8
    %s134 = ssub.s32 8, %s133
    %v135 = vlaneseq
    %v136 = vshrl.u32 %v135, 7
    %v137 = vstv %s134
    %vm138 = vcmp.lt.s32.totalorder %v136, %v137
    %v139 = vsel %vm138, %v131, 0.0
    %140 = vst.msk [vmem:[#allocation2] sm:$0xff] %vm26, %v139
    // Predicated region
    $region18: #{tpu_custom_call.1} parent=1 // pred_check
      _
    $region19: #{tpu_custom_call.1} parent=1 // pred_check_branch
      %142 = sbr.rel (0) target = $region21
    $region20: #{tpu_custom_call.1} parent=1 // pred_region
      %144 = vsyncadd [#allocation3], 0
      %s146 = sshll.u32 [#allocation2], 4
      %s147 = int_to_ptr.vmem [resolvable:$true] %s146
      %s148 = sshll.u32 %s4, 4
      %s149 = int_to_ptr.hbm [resolvable:$true] %s148
      %151 = dma.vmem_to_hbm [thread:$0]  %s147, 128, %s149, [#allocation3]
    $region21: #{tpu_custom_call.1} parent=1 // pred_fallthru
      _
    // Predicated region
    $region22: #{tpu_custom_call.1} parent=1 // pred_check
      _
    $region23: #{tpu_custom_call.1} parent=1 // pred_check_branch
      %153 = sbr.rel (0) target = $region25
    $region24: #{tpu_custom_call.1} parent=1 // pred_region
      %155 = dma.done [#allocation3], 128
    $region25: #{tpu_custom_call.1} parent=1 // pred_fallthru
      _
    %156 = vsyncpa [#allocation3], 1

// kernel: tpu_custom_call.1
$region0: #{tpu_custom_call.1}
  #allocation0 [shape = 'u32[]', space=smem, size = 0x4, offset = 0x4, fixed_abs, tag = 'smem constant byte address 0x4 - core index']
  #allocation1 [shape = 'u32[72,128]{1,0:T(1,128)}', space=vmem, size = 0x9000, scoped, tag = 'internal scratch']
  %s0 = inlined_call_operand.vmem [shape: f32[8,32], index: 0, kind: input, shape index: {}]
  %s1 = inlined_call_operand.vmem [shape: f32[8,32], index: 1, kind: input, shape index: {}]
  %s2 = inlined_call_operand.vmem [shape: f32[32,8], index: 2, kind: input, shape index: {}]
  %s3 = inlined_call_operand.vmem [shape: f32[1,8], index: 3, kind: input, shape index: {}]
  %s4 = inlined_call_operand.hbm [shape: f32[8,32], index: 4, kind: output, shape index: {}]
  %s5 = sld [smem:[#allocation0]]
  $region26: #{tpu_custom_call.1} parent=0
    _
  %s7 = ssub.s32 1, %s5
  %s8 = scalar_select 0, %s7, %s5
  $region1: #{tpu_custom_call.1} parent=0
    #allocation2 [shape = 'u8[4096]{0}', space=vmem, size = 0x1000, scoped, tag = 'output window, operand 0, single buffered']
    #allocation3 [shape = 's32[1]{0}', space=sflag, size = 0x4, scoped, tag = 'scoped memory for tpu_custom_call.1']
    %9 = vsyncpa [#allocation3], 0
    // Predicated region
    $region2: #{tpu_custom_call.1} parent=1 // pred_check
      _
    $region3: #{tpu_custom_call.1} parent=1 // pred_check_branch
      %11 = sbr.rel (0) target = $region5
    $region4: #{tpu_custom_call.1} parent=1 // pred_region
      _
    $region5: #{tpu_custom_call.1} parent=1 // pred_fallthru
      _
    // Predicated region
    $region6: #{tpu_custom_call.1} parent=1 // pred_check
      _
    $region7: #{tpu_custom_call.1} parent=1 // pred_check_branch
      %13 = sbr.rel (0) target = $region9
    $region8: #{tpu_custom_call.1} parent=1 // pred_region
      _
    $region9: #{tpu_custom_call.1} parent=1 // pred_fallthru
      _
    // Predicated region
    $region10: #{tpu_custom_call.1} parent=1 // pred_check
      _
    $region11: #{tpu_custom_call.1} parent=1 // pred_check_branch
      %15 = sbr.rel (0) target = $region13
    $region12: #{tpu_custom_call.1} parent=1 // pred_region
      _
    $region13: #{tpu_custom_call.1} parent=1 // pred_fallthru
      _
    // Predicated region
    $region14: #{tpu_custom_call.1} parent=1 // pred_check
      _
    $region15: #{tpu_custom_call.1} parent=1 // pred_check_branch
      %17 = sbr.rel (0) target = $region17
    $region16: #{tpu_custom_call.1} parent=1 // pred_region
      _
    $region17: #{tpu_custom_call.1} parent=1 // pred_fallthru
      _
    %v18 = vld [vmem:[%s0] sm:$0xff]
    %v19 = vld [vmem:[%s1] sm:$0xff]
    %v20 = vld [vmem:[%s2] sm:$0xff]
    %v21 = vld [vmem:[%s2 + $0x8] sm:$0xff]
    %v22 = vld [vmem:[%s2 + $0x10] sm:$0xff]
    %v23 = vld [vmem:[%s2 + $0x18] sm:$0xff]
    %v24 = vld [vmem:[%s3] sm:$0x1]
    %v25 = vmul.f32 %v18, %v18
    %vm26 = vcmask 261120
    %v27 = vsel %vm26, %v25, 0.0
    %28 = vadd.xlane.f32.xlu0 %v27
    %v29 = vpop.xlane.xlu0 %28
    %v31 = vsel %vm26, %v18, 0
    %33 = vmatpush.msra.mxu0 0.0
    %34 = vmatpush.msra.mxu0 0.0
    %35 = vmatpush.msra.mxu0 0.0
    %36 = vmatpush.msra.mxu0 0.0
    %37 = vmatpush.msra.mxu0 0.0
    %38 = vmatpush.msra.mxu0 0.0
    %39 = vmatpush.msra.mxu0 0.0
    %40 = vmatpush.msra.mxu0 0.0
    %41 = vmatpush.msra.mxu0 0.0
    %42 = vmatpush.msra.mxu0 0.0
    %43 = vmatpush.msra.mxu0 0.0
    %44 = vmatpush.msra.mxu0 0.0
    %45 = vmatpush.msra.mxu0 %v23
    %46 = vmatpush.msra.mxu0 %v22
    %47 = vmatpush.msra.mxu0 %v21
    %48 = vmatpush.msra.mxu0 %v20
    %49 = vmatmul.f32.gmra.mxu0 %v31
    %v50 = vpop.f32.mrf.mxu0
    %v51 = vadd.f32 0.0, %v50
    %52 = vdwg.mxu0
    %v54 = vperm.slane %v24, 0
    %v56 = vadd.f32 %v29, %v54
    %v57 = vmul.f32 %v51, 2.0
    %v58 = vsub.f32 %v56, %v57
    %v59 = vmax.f32 %v58, 0.0
    %v60 = vrsqrt.pop %v59
    %v61 = vmul.f32 %v60, %v59
    %v62 = vmul.f32 %v61, %v60
    %v63 = vmul.f32 0.5, %v62
    %v64 = vsub.f32 1.5, %v63
    %v65 = vmul.f32 %v60, %v64
    %v66 = vmul.f32 %v59, %v65
    %vm67 = vcmp.eq.f32.partialorder %v59, inf
    %v68 = vsel %vm67, %v59, %v66
    %vm69 = vcmp.eq.f32.partialorder %v59, 0.0
    %v70 = vand.u32 %v59, 2147483648
    %v71 = vsel %vm69, %v70, %v68
    %v72 = vsub.f32 0.0, %v71
    %v73 = vmul.f32 %v72, 4.0
    %vm74 = vcmask 64512
    %v75 = vsel %vm74, %v73, -inf
    %76 = vmax.xlane.f32.xlu0 %v75
    %v77 = vpop.xlane.xlu0 %76
    %v78 = vsub.f32 %v73, %v77
    %v79 = vmul.f32 %v78, 1.442695
    %v80 = vpow.pop %v79
    %v81 = vsel %vm74, %v80, 0.0
    %82 = vadd.xlane.f32.xlu0 %v81
    %v83 = vpop.xlane.xlu0 %82
    %v84 = vrcp.pop %v83
    %v85 = vmul.f32 %v80, %v84
    %v86 = vlaneseq
    %v87 = vand.u32 %v86, 127
    %vm88 = vcmp.eq.f32.partialorder %v73, %v77
    %v89 = vsel %vm88, %v87, 8
    %v90 = vsel %vm74, %v89, 2147483647
    %v91 = vand.u32 %v90, 65535
    %v92 = vshra.s32 %v90, 16
    %v93 = vcvt.s32.f32 %v91
    %v94 = vcvt.s32.f32 %v92
    %95 = vmin.xlane.f32.xlu0 %v94
    %v96 = vpop.xlane.xlu0 %95
    %vm97 = vcmp.eq.f32.partialorder %v94, %v96
    %v98 = vsel %vm97, %v93, inf
    %99 = vmin.xlane.f32.xlu0 %v98
    %v100 = vpop.xlane.xlu0 %99
    %v101 = vcvt.f32.s32 %v100
    %v102 = vcvt.f32.s32 %v96
    %v103 = vshll.u32 %v102, 16
    %v104 = vadd.s32 %v103, %v101
    %vm105 = vcmp.eq.s32.totalorder %v87, %v104
    %v106 = vsel %vm105, 1, 0
    %v107 = vcvt.s32.f32 %v106
    %v108 = vsub.f32 %v107, %v85
    %v109 = vadd.f32 %v108, %v85
    %v111 = vsel %vm74, %v109, 0
    %113 = vmatpush.msra.mxu0 0.0
    %114 = vmatpush.msra.mxu0 0.0
    %115 = vmatpush.msra.mxu0 0.0
    %116 = vmatpush.msra.mxu0 0.0
    %117 = vmatpush.msra.mxu0 0.0
    %118 = vmatpush.msra.mxu0 0.0
    %119 = vmatpush.msra.mxu0 0.0
    %120 = vmatpush.msra.mxu0 0.0
    %121 = vmatpush.msra.mxu0 0.0
    %122 = vmatpush.msra.mxu0 0.0
    %123 = vmatpush.msra.mxu0 0.0
    %124 = vmatpush.msra.mxu0 0.0
    %125 = vmatpush.msra.mxu0 0.0
    %126 = vmatpush.msra.mxu0 0.0
    %127 = vmatpush.msra.mxu0 0.0
    %128 = vmatpush.msra.mxu0 %v19
    %129 = vmatmul.f32.gmra.mxu0 %v111
    %v130 = vpop.f32.mrf.mxu0
    %v131 = vadd.f32 0.0, %v130
    %132 = vdwg.mxu0
    %s133 = smul.u32 0, 8
    %s134 = ssub.s32 8, %s133
    %v135 = vlaneseq
    %v136 = vshrl.u32 %v135, 7
    %v137 = vstv %s134
    %vm138 = vcmp.lt.s32.totalorder %v136, %v137
    %v139 = vsel %vm138, %v131, 0.0
    %140 = vst.msk [vmem:[#allocation2] sm:$0xff] %vm26, %v139
    // Predicated region
    $region18: #{tpu_custom_call.1} parent=1 // pred_check
      _
    $region19: #{tpu_custom_call.1} parent=1 // pred_check_branch
      %142 = sbr.rel (0) target = $region21
    $region20: #{tpu_custom_call.1} parent=1 // pred_region
      %144 = vsyncadd [#allocation3], 0
      %s146 = sshll.u32 [#allocation2], 4
      %s147 = int_to_ptr.vmem [resolvable:$true] %s146
      %s148 = sshll.u32 %s4, 4
      %s149 = int_to_ptr.hbm [resolvable:$true] %s148
      %151 = dma.vmem_to_hbm [thread:$0]  %s147, 128, %s149, [#allocation3]
    $region21: #{tpu_custom_call.1} parent=1 // pred_fallthru
      _
    // Predicated region
    $region22: #{tpu_custom_call.1} parent=1 // pred_check
      _
    $region23: #{tpu_custom_call.1} parent=1 // pred_check_branch
      %153 = sbr.rel (0) target = $region25
    $region24: #{tpu_custom_call.1} parent=1 // pred_region
      %155 = dma.done [#allocation3], 128
    $region25: #{tpu_custom_call.1} parent=1 // pred_fallthru
      _
    %156 = vsyncpa [#allocation3], 1

</llo_original>
